<compile_context>
chip_gen: v7x
topology: tpu7x:2x2x1
jax: 0.10.0
libtpu: 0.0.40
codegen_flags: <defaults>
</compile_context>

<pallas_src>
import jax
import jax.numpy as jnp
from jax.experimental import pallas as pl
from jax.experimental.pallas import tpu as pltpu


def _fusion_loss_kernel(params_ref, all_ref, text_ref, audio_ref, out_ref):
    # params_ref: SMEM f32[3] = [a, b, c]   (persistent parameter array)
    # all_ref / text_ref / audio_ref: SMEM f32[1] scalar losses
    # out_ref:    SMEM f32[1]
    # Pure scalar-ALU computation: sld + smul/sadd only; never touches the
    # VPU/vreg pipeline or VMEM.
    out_ref[0] = (params_ref[0] * all_ref[0]
                  + params_ref[1] * text_ref[0]
                  + params_ref[2] * audio_ref[0])


_SMEM_SPEC = pl.BlockSpec(memory_space=pltpu.MemorySpace.SMEM)


def _fusion_loss_pallas(params, all_loss, text_loss, audio_loss):
    # No concatenation: params is passed through as-is; each scalar loss is a
    # trivial scalar->(1,) reshape (no HBM round-trip of a freshly built array).
    params_f32 = jnp.asarray(params, jnp.float32)
    all_f32 = jnp.asarray(all_loss, jnp.float32).reshape((1,))
    text_f32 = jnp.asarray(text_loss, jnp.float32).reshape((1,))
    audio_f32 = jnp.asarray(audio_loss, jnp.float32).reshape((1,))

    out = pl.pallas_call(
        _fusion_loss_kernel,
        out_shape=jax.ShapeDtypeStruct((1,), jnp.float32),
        grid=(),
        in_specs=[_SMEM_SPEC, _SMEM_SPEC, _SMEM_SPEC, _SMEM_SPEC],
        out_specs=_SMEM_SPEC,
    )(params_f32, all_f32, text_f32, audio_f32)

    return out[0]  # 0-d scalar, matching the PyTorch 0-d tensor result


def _result_dtype(params, all_loss, text_loss, audio_loss):
    return jnp.result_type(
        jnp.asarray(params).dtype,
        jnp.asarray(all_loss).dtype,
        jnp.asarray(text_loss).dtype,
        jnp.asarray(audio_loss).dtype,
    )


@jax.custom_vjp
def fusion_loss(params, all_loss, text_loss, audio_loss):
    """JAX equivalent of FusionLoss.forward.

    `params` is the (3,) array [a, b, c] -- the JAX representation of the
    module's three scalar nn.Parameters (stored once, not rebuilt per step).
    """
    out = _fusion_loss_pallas(params, all_loss, text_loss, audio_loss)
    return out.astype(_result_dtype(params, all_loss, text_loss, audio_loss))


def _fusion_loss_fwd(params, all_loss, text_loss, audio_loss):
    out = fusion_loss(params, all_loss, text_loss, audio_loss)
    return out, (params, all_loss, text_loss, audio_loss)


def _fusion_loss_bwd(residuals, g):
    params, all_loss, text_loss, audio_loss = residuals
    gf = jnp.asarray(g, jnp.float32)
    params_f32 = jnp.asarray(params, jnp.float32)
    losses_f32 = jnp.stack([
        jnp.asarray(all_loss, jnp.float32).reshape(()),
        jnp.asarray(text_loss, jnp.float32).reshape(()),
        jnp.asarray(audio_loss, jnp.float32).reshape(()),
    ])
    # d/d[a,b,c] = [all, text, audio];  d/dall = a, d/dtext = b, d/daudio = c.
    # Cotangents are cast back to each primal's dtype (bf16-safe).
    d_params = (gf * losses_f32).astype(jnp.asarray(params).dtype)
    d_all = (gf * params_f32[0]).astype(jnp.asarray(all_loss).dtype)
    d_text = (gf * params_f32[1]).astype(jnp.asarray(text_loss).dtype)
    d_audio = (gf * params_f32[2]).astype(jnp.asarray(audio_loss).dtype)
    return d_params, d_all, d_text, d_audio


fusion_loss.defvjp(_fusion_loss_fwd, _fusion_loss_bwd)


if __name__ == "__main__":
    key = jax.random.PRNGKey(0)
    k1, k2, k3 = jax.random.split(key, 3)

    # Parameter init matching nn.Parameter(torch.tensor(1.0)) x3, stored as
    # one persistent (3,) array [a, b, c].
    params = jnp.ones((3,), jnp.float32)

    # Synthetic scalar losses (as produced by upstream criterion modules).
    all_loss = jax.random.uniform(k1, (), jnp.float32)
    text_loss = jax.random.uniform(k2, (), jnp.float32)
    audio_loss = jax.random.uniform(k3, (), jnp.float32)

    out = fusion_loss(params, all_loss, text_loss, audio_loss)
    out = jax.block_until_ready(out)

    # Forward reference check in plain JAX.
    ref = params[0] * all_loss + params[1] * text_loss + params[2] * audio_loss
    assert jnp.allclose(out, ref, rtol=1e-6, atol=1e-6), (out, ref)

    # Gradient check (custom_vjp): grad wrt params = losses, grad wrt each
    # loss = the matching parameter.
    grads = jax.grad(fusion_loss, argnums=(0, 1, 2, 3))(
        params, all_loss, text_loss, audio_loss)
    d_params, d_all, d_text, d_audio = grads
    expected_params = jnp.stack([all_loss, text_loss, audio_loss])
    assert jnp.allclose(d_params, expected_params, rtol=1e-6, atol=1e-6)
    assert jnp.allclose(d_all, params[0], rtol=1e-6, atol=1e-6)
    assert jnp.allclose(d_text, params[1], rtol=1e-6, atol=1e-6)
    assert jnp.allclose(d_audio, params[2], rtol=1e-6, atol=1e-6)

    # bf16 losses path (dtype-strictness fix): must run and differentiate.
    out_bf16 = fusion_loss(params, all_loss.astype(jnp.bfloat16),
                           text_loss.astype(jnp.bfloat16),
                           audio_loss.astype(jnp.bfloat16))
    _ = jax.block_until_ready(out_bf16)
    _ = jax.grad(fusion_loss, argnums=(0,))(
        params, all_loss.astype(jnp.bfloat16),
        text_loss.astype(jnp.bfloat16), audio_loss.astype(jnp.bfloat16))

    print("KERNEL_OK")
</pallas_src>

<mosaic_0001>
module attributes {stable_mosaic.version = 11 : i64} {
  func.func @_fusion_loss_kernel(%arg0: memref<3xf32, #tpu.memory_space<smem>>, %arg1: memref<1xf32, #tpu.memory_space<smem>>, %arg2: memref<1xf32, #tpu.memory_space<smem>>, %arg3: memref<1xf32, #tpu.memory_space<smem>>, %arg4: memref<1xf32, #tpu.memory_space<smem>>) attributes {dimension_semantics = [], scalar_prefetch = 0 : i64, scratch_operands = 0 : i64, tpu.core_type = #tpu.core_type<tc>} {
    %c0 = arith.constant 0 : index
    %0 = memref.load %arg0[%c0] : memref<3xf32, #tpu.memory_space<smem>>
    %c0_0 = arith.constant 0 : index
    %1 = memref.load %arg1[%c0_0] : memref<1xf32, #tpu.memory_space<smem>>
    %2 = arith.mulf %0, %1 : f32
    %c1 = arith.constant 1 : index
    %3 = memref.load %arg0[%c1] : memref<3xf32, #tpu.memory_space<smem>>
    %c0_1 = arith.constant 0 : index
    %4 = memref.load %arg2[%c0_1] : memref<1xf32, #tpu.memory_space<smem>>
    %5 = arith.mulf %3, %4 : f32
    %6 = arith.addf %2, %5 : f32
    %c2 = arith.constant 2 : index
    %7 = memref.load %arg0[%c2] : memref<3xf32, #tpu.memory_space<smem>>
    %c0_2 = arith.constant 0 : index
    %8 = memref.load %arg3[%c0_2] : memref<1xf32, #tpu.memory_space<smem>>
    %9 = arith.mulf %7, %8 : f32
    %10 = arith.addf %6, %9 : f32
    %c0_3 = arith.constant 0 : index
    %11 = memref.load %arg4[%c0_3] : memref<1xf32, #tpu.memory_space<smem>>
    memref.store %10, %arg4[%c0_3] : memref<1xf32, #tpu.memory_space<smem>>
    return
  }
}

</mosaic_0001>

<llo_original>
// kernel: tpu_custom_call.1
$region0: #{tpu_custom_call.1}
  #allocation0 [shape = 'u32[]', space=smem, size = 0x4, offset = 0x4, fixed_abs, tag = 'smem constant byte address 0x4 - core index']
  #allocation1 [shape = 'u32[144,128]{1,0:T(1,128)}', space=vmem, size = 0x12000, scoped, tag = 'internal scratch']
  #allocation2 [shape = 'f32[1]{0:T(128)S(6)}', space=smem, size = 0x200, scoped, tag = 'scoped memory for tpu_custom_call.1']
  #allocation3 [shape = 'f32[1]{0:T(128)S(6)}', space=smem, size = 0x200, scoped, tag = 'scoped memory for tpu_custom_call.1']
  #allocation4 [shape = 'f32[1]{0:T(128)S(6)}', space=smem, size = 0x200, scoped, tag = 'scoped memory for tpu_custom_call.1']
  %s0 = inlined_call_operand.vmem [shape: f32[3], index: 0, kind: input, shape index: {}]
  %s1 = inlined_call_operand.<no memory space> [shape: f32[1], index: 1, kind: input, shape index: {}]
  %s2 = inlined_call_operand.<no memory space> [shape: f32[1], index: 2, kind: input, shape index: {}]
  %s3 = inlined_call_operand.<no memory space> [shape: f32[1], index: 3, kind: input, shape index: {}]
  %s4 = inlined_call_operand.hbm [shape: f32[1], index: 4, kind: output, shape index: {}]
  %s5 = sld [smem:[#allocation0]]
  $region30: #{tpu_custom_call.1} parent=0
    _
  %s7 = ssub.s32 1, %s5
  %s8 = scalar_select 0, %s7, %s5
  %9 = sst [smem:[#allocation2]] %s1
  %10 = sst [smem:[#allocation3]] %s2
  %11 = sst [smem:[#allocation4]] %s3
  $region1: #{tpu_custom_call.1} parent=0
    #allocation5 [shape = 'u8[512]{0}', space=smem, size = 0x200, scoped, tag = 'input window, operand 0, single buffered']
    #allocation6 [shape = 's32[1]{0}', space=sflag, size = 0x4, scoped, tag = 'scoped memory for tpu_custom_call.1']
    #allocation7 [shape = 's32[1]{0}', space=sflag, size = 0x4, scoped, tag = 'scoped memory for tpu_custom_call.1']
    #allocation8 [shape = 'u8[512]{0}', space=smem, size = 0x200, scoped, tag = 'output window, operand 0, single buffered']
    %12 = vsyncpa [#allocation7], 0
    %13 = vsyncpa [#allocation6], 0
    // Predicated region
    $region2: #{tpu_custom_call.1} parent=1 // pred_check
      _
    $region3: #{tpu_custom_call.1} parent=1 // pred_check_branch
      %15 = sbr.rel (0) target = $region5
    $region4: #{tpu_custom_call.1} parent=1 // pred_region
      %s17 = ssub.s32 16, 16
      %18 = vsyncadd [#allocation7], %s17
      %s20 = sshll.u32 %s0, 4
      %s21 = int_to_ptr.vmem [resolvable:$true] %s20
      %23 = dma.vmem_to_smem %s21, 16, [#allocation5], [#allocation7]
    $region5: #{tpu_custom_call.1} parent=1 // pred_fallthru
      _
    // Predicated region
    $region6: #{tpu_custom_call.1} parent=1 // pred_check
      _
    $region7: #{tpu_custom_call.1} parent=1 // pred_check_branch
      %25 = sbr.rel (0) target = $region9
    $region8: #{tpu_custom_call.1} parent=1 // pred_region
      _
    $region9: #{tpu_custom_call.1} parent=1 // pred_fallthru
      _
    // Predicated region
    $region10: #{tpu_custom_call.1} parent=1 // pred_check
      _
    $region11: #{tpu_custom_call.1} parent=1 // pred_check_branch
      %27 = sbr.rel (0) target = $region13
    $region12: #{tpu_custom_call.1} parent=1 // pred_region
      _
    $region13: #{tpu_custom_call.1} parent=1 // pred_fallthru
      _
    // Predicated region
    $region14: #{tpu_custom_call.1} parent=1 // pred_check
      _
    $region15: #{tpu_custom_call.1} parent=1 // pred_check_branch
      %29 = sbr.rel (0) target = $region17
    $region16: #{tpu_custom_call.1} parent=1 // pred_region
      _
    $region17: #{tpu_custom_call.1} parent=1 // pred_fallthru
      _
    // Predicated region
    $region18: #{tpu_custom_call.1} parent=1 // pred_check
      _
    $region19: #{tpu_custom_call.1} parent=1 // pred_check_branch
      %31 = sbr.rel (0) target = $region21
    $region20: #{tpu_custom_call.1} parent=1 // pred_region
      %32 = dma.done [#allocation7], 16
    $region21: #{tpu_custom_call.1} parent=1 // pred_fallthru
      _
    %33 = sfence
    %s34 = sld [smem:[#allocation5]]
    %s35 = sld [smem:[#allocation2]]
    %s36 = smul.f32 %s34, %s35
    %s37 = sld [smem:[#allocation5 + $0x1]]
    %s38 = sld [smem:[#allocation3]]
    %s39 = smul.f32 %s37, %s38
    %s40 = sadd.f32 %s36, %s39
    %s41 = sld [smem:[#allocation5 + $0x2]]
    %s42 = sld [smem:[#allocation4]]
    %s43 = smul.f32 %s41, %s42
    %s44 = sadd.f32 %s40, %s43
    %s45 = scalar_lea.smem [#allocation8], 0
    %46 = sst [smem:[%s45]] %s44
    // Predicated region
    $region22: #{tpu_custom_call.1} parent=1 // pred_check
      _
    $region23: #{tpu_custom_call.1} parent=1 // pred_check_branch
      %48 = sbr.rel (0) target = $region25
    $region24: #{tpu_custom_call.1} parent=1 // pred_region
      %s50 = ssub.s32 16, 16
      %51 = vsyncadd [#allocation6], %s50
      %54 = dma.smem_to_hbm [#allocation8], 16, %s4, [#allocation6]
    $region25: #{tpu_custom_call.1} parent=1 // pred_fallthru
      _
    // Predicated region
    $region26: #{tpu_custom_call.1} parent=1 // pred_check
      _
    $region27: #{tpu_custom_call.1} parent=1 // pred_check_branch
      %56 = sbr.rel (0) target = $region29
    $region28: #{tpu_custom_call.1} parent=1 // pred_region
      %57 = dma.done [#allocation6], 16
    $region29: #{tpu_custom_call.1} parent=1 // pred_fallthru
      _
    %58 = sfence
    %59 = vsyncpa [#allocation6], 1
    %60 = vsyncpa [#allocation7], 1

</llo_original>
